<compile_context>
chip_gen: v7x
topology: tpu7x:2x2x1
jax: 0.10.0
libtpu: 0.0.40
codegen_flags: <defaults>
</compile_context>

<pallas_src>
import jax
import jax.numpy as jnp
from jax.experimental import pallas as pl
from jax.experimental.pallas import tpu as pltpu


def _round_up(x: int, m: int) -> int:
    return (x + m - 1) // m * m


def _head_kernel(x_ref, w1_ref, b1_ref, w2_ref, b2_ref, o_ref):
    # x_ref: (TM, Hp) in the caller's dtype; w*_ref: (Hp, Hp) in (in, out)
    # layout; b*_ref: (1, Hp) f32.  Cast activations to the MXU dtype in-kernel
    # (VPU) so the wrapper never writes a casted activation copy to HBM.
    x = x_ref[...].astype(w1_ref.dtype)
    h = jnp.dot(x, w1_ref[...], preferred_element_type=jnp.float32) + b1_ref[...]
    h = jnp.tanh(h)                                           # EUP, f32
    y = jnp.dot(h.astype(w2_ref.dtype), w2_ref[...],
                preferred_element_type=jnp.float32) + b2_ref[...]
    o_ref[...] = y.astype(o_ref.dtype)


def prepare_params(w_dense, b_dense, w_out, b_out,
                   param_dtype=jnp.bfloat16, lane_multiple=128):
    """One-time parameter prep (keep OFF the per-call hot path).

    torch-layout (out, in) weights -> (in, out); hidden dim zero-padded to a
    lane-dense multiple (128; pass 256 for odd hidden sizes on v6e/v7x —
    BERT's 768/1024 are already multiples of both, so it is a no-op there).
    Weights cast to `param_dtype` (bf16 = native MXU rate on all generations);
    biases kept in f32.  Zero padding is an exact no-op through the tanh-MLP.
    """
    H = w_dense.shape[0]
    Hp = _round_up(H, lane_multiple)
    pad = Hp - H

    def prep_w(w):
        wt = jnp.transpose(w).astype(param_dtype)             # (in, out)
        return jnp.pad(wt, ((0, pad), (0, pad)))

    def prep_b(b):
        return jnp.pad(b.astype(jnp.float32), (0, pad)).reshape(1, Hp)

    return prep_w(w_dense), prep_b(b_dense), prep_w(w_out), prep_b(b_out)


def _vmem_phys_bytes() -> int:
    try:
        return int(pltpu.get_tpu_info().vmem_capacity_bytes)
    except Exception:
        return 64 << 20            # conservative fallback (v7x per-TC VMEM)


def bert_contrastive_head(feature, w1t, b1, w2t, b2, *, tm=None):
    """feature: (B, S, H).  w1t/w2t: (Hp, Hp) prepared (in, out).  b1/b2: (1, Hp) f32."""
    B, S, H = feature.shape
    Hp = w1t.shape[0]
    M = B * S

    x2d = feature.reshape(M, H)
    if Hp != H:
        # Only for hidden sizes that are not already 128-multiples (never for
        # BERT 768/1024): pad columns once.  Rows are never padded.
        x2d = jnp.pad(x2d, ((0, 0), (0, Hp - H)))

    in_b = jnp.dtype(x2d.dtype).itemsize
    out_b = jnp.dtype(feature.dtype).itemsize
    w_b = jnp.dtype(w1t.dtype).itemsize

    phys_vmem = _vmem_phys_bytes()

    # Generation-aware row-tile selection.
    granule = {4: 8, 2: 16, 1: 32}.get(int(in_b), 8)
    if tm is None:
        tm = 512 if phys_vmem >= (96 << 20) else 256          # v5e/v6e vs v7x
    if M >= 2 * tm:
        TM = tm
    else:
        # Split small/medium M into >= 2 row tiles so the "parallel" grid axis
        # can shard across v7x's two TensorCores.
        TM = max(granule, _round_up(pl.cdiv(M, 2), granule))
    grid = (pl.cdiv(M, TM),)

    # VMEM budget: double-buffered x/out row tiles + resident weights/biases
    # (constant index_map -> never re-DMA'd; still counted twice because the
    # pipeline may allocate both buffers for them).
    # TODO(synk): single-buffer W1/b1/W2/b2 via pipeline_mode=pl.Buffered(1)
    # and add a K-split f32-accumulator fallback for hidden sizes whose
    # resident weights do not fit v7x's 64 MiB even in bf16.
    vmem_need = (2 * TM * Hp * (in_b + out_b)
                 + 2 * (2 * Hp * Hp * w_b + 2 * Hp * 4))
    vmem_limit = max(min(int(vmem_need) + (8 << 20), (phys_vmem * 85) // 100),
                     32 << 20)

    cost = pl.CostEstimate(
        flops=int(4 * M * Hp * Hp),                           # two GEMMs
        transcendentals=int(M * Hp),                          # tanh
        bytes_accessed=int(M * Hp * (in_b + out_b)
                           + 2 * Hp * Hp * w_b + 2 * Hp * 4),
    )

    out2d = pl.pallas_call(
        _head_kernel,
        out_shape=jax.ShapeDtypeStruct((M, Hp), feature.dtype),
        grid=grid,
        in_specs=[
            pl.BlockSpec((TM, Hp), lambda i: (i, 0)),   # x: streamed row tiles
            pl.BlockSpec((Hp, Hp), lambda i: (0, 0)),   # W1: VMEM-resident
            pl.BlockSpec((1, Hp), lambda i: (0, 0)),    # b1: VMEM-resident
            pl.BlockSpec((Hp, Hp), lambda i: (0, 0)),   # W2: VMEM-resident
            pl.BlockSpec((1, Hp), lambda i: (0, 0)),    # b2: VMEM-resident
        ],
        out_specs=pl.BlockSpec((TM, Hp), lambda i: (i, 0)),
        compiler_params=pltpu.CompilerParams(
            dimension_semantics=("parallel",),          # shard rows over v7x's 2 TCs
            vmem_limit_bytes=int(vmem_limit),
        ),
        cost_estimate=cost,
    )(x2d, w1t, b1, w2t, b2)

    if Hp != H:
        out2d = out2d[:, :H]
    return out2d.reshape(B, S, H)


def _init_linear(key, fan_in, fan_out):
    # Stand-in for torch's default Linear init: U(-1/sqrt(fan_in), 1/sqrt(fan_in)).
    kw, kb = jax.random.split(key)
    bound = 1.0 / jnp.sqrt(jnp.float32(fan_in))
    w = jax.random.uniform(kw, (fan_out, fan_in), jnp.float32, -bound, bound)
    b = jax.random.uniform(kb, (fan_out,), jnp.float32, -bound, bound)
    return w, b


if __name__ == "__main__":
    B, S, H = 2, 8, 32  # batch, seq, hidden_size (tiny demo shape)

    key = jax.random.PRNGKey(0)
    k_feat, k_dense, k_out = jax.random.split(key, 3)

    feature = jax.random.normal(k_feat, (B, S, H), jnp.float32)
    w_dense, b_dense = _init_linear(k_dense, H, H)
    w_out, b_out = _init_linear(k_out, H, H)

    head = jax.jit(bert_contrastive_head)

    # Pure-JAX reference (dropout = identity in eval mode).
    ref = jnp.tanh(feature @ w_dense.T + b_dense) @ w_out.T + b_out

    # Production path: bf16 MXU operands (native rate on v5e/v6e/v7x).
    params_bf16 = prepare_params(w_dense, b_dense, w_out, b_out,
                                 param_dtype=jnp.bfloat16)
    y = jax.block_until_ready(head(feature, *params_bf16))
    assert y.shape == (B, S, H) and y.dtype == feature.dtype
    assert jnp.allclose(y, ref, atol=5e-2, rtol=5e-2), "bf16 path mismatch"

    # Exactness check with f32 weights (same kernel, tight tolerance).
    params_f32 = prepare_params(w_dense, b_dense, w_out, b_out,
                                param_dtype=jnp.float32)
    y32 = jax.block_until_ready(head(feature, *params_f32))
    assert jnp.allclose(y32, ref, atol=1e-4, rtol=1e-4), "f32 path mismatch"

    print("KERNEL_OK")
</pallas_src>

<mosaic_0001>
module attributes {stable_mosaic.version = 11 : i64} {
  func.func @_head_kernel(%arg0: i32, %arg1: memref<8x128xf32, #tpu.memory_space<vmem>>, %arg2: memref<128x128xbf16, #tpu.memory_space<vmem>>, %arg3: memref<1x128xf32, #tpu.memory_space<vmem>>, %arg4: memref<128x128xbf16, #tpu.memory_space<vmem>>, %arg5: memref<1x128xf32, #tpu.memory_space<vmem>>, %arg6: memref<8x128xf32, #tpu.memory_space<vmem>>) attributes {dimension_semantics = [#tpu.dimension_semantics<parallel>], iteration_bounds = array<i64: 2>, scalar_prefetch = 0 : i64, scratch_operands = 0 : i64, tpu.core_type = #tpu.core_type<tc>, window_params = [{transform_indices = @transform_0, window_bounds = array<i64: 8, 128>}, {pipeline_mode = #tpu.pipeline_mode<synchronous>, transform_indices = @transform_1, window_bounds = array<i64: 128, 128>}, {pipeline_mode = #tpu.pipeline_mode<synchronous>, transform_indices = @transform_2, window_bounds = array<i64: 1, 128>}, {pipeline_mode = #tpu.pipeline_mode<synchronous>, transform_indices = @transform_3, window_bounds = array<i64: 128, 128>}, {pipeline_mode = #tpu.pipeline_mode<synchronous>, transform_indices = @transform_4, window_bounds = array<i64: 1, 128>}, {transform_indices = @transform_5, window_bounds = array<i64: 8, 128>}]} {
    %c0 = arith.constant 0 : index
    %c0_0 = arith.constant 0 : index
    %0 = vector.load %arg1[%c0, %c0_0] : memref<8x128xf32, #tpu.memory_space<vmem>>, vector<8x128xf32>
    %1 = arith.truncf %0 : vector<8x128xf32> to vector<8x128xbf16>
    %c0_1 = arith.constant 0 : index
    %c0_2 = arith.constant 0 : index
    %2 = vector.load %arg2[%c0_1, %c0_2] : memref<128x128xbf16, #tpu.memory_space<vmem>>, vector<128x128xbf16>
    %cst = arith.constant dense<0.000000e+00> : vector<8x128xf32>
    %3 = tpu.matmul %1, %2, %cst {dimension_numbers = #tpu.dot_dimension_numbers<[1], [0], [0], [1], [0, 0, 1, 1], [], []>} : vector<8x128xbf16>, vector<128x128xbf16>, vector<8x128xf32> -> vector<8x128xf32>
    %c0_3 = arith.constant 0 : index
    %c0_4 = arith.constant 0 : index
    %4 = vector.load %arg3[%c0_3, %c0_4] : memref<1x128xf32, #tpu.memory_space<vmem>>, vector<1x128xf32>
    %5 = vector.broadcast %4 : vector<1x128xf32> to vector<8x128xf32>
    %6 = arith.addf %3, %5 : vector<8x128xf32>
    %7 = math.tanh %6 : vector<8x128xf32>
    %8 = arith.truncf %7 : vector<8x128xf32> to vector<8x128xbf16>
    %c0_5 = arith.constant 0 : index
    %c0_6 = arith.constant 0 : index
    %9 = vector.load %arg4[%c0_5, %c0_6] : memref<128x128xbf16, #tpu.memory_space<vmem>>, vector<128x128xbf16>
    %cst_7 = arith.constant dense<0.000000e+00> : vector<8x128xf32>
    %10 = tpu.matmul %8, %9, %cst_7 {dimension_numbers = #tpu.dot_dimension_numbers<[1], [0], [0], [1], [0, 0, 1, 1], [], []>} : vector<8x128xbf16>, vector<128x128xbf16>, vector<8x128xf32> -> vector<8x128xf32>
    %c0_8 = arith.constant 0 : index
    %c0_9 = arith.constant 0 : index
    %11 = vector.load %arg5[%c0_8, %c0_9] : memref<1x128xf32, #tpu.memory_space<vmem>>, vector<1x128xf32>
    %12 = vector.broadcast %11 : vector<1x128xf32> to vector<8x128xf32>
    %13 = arith.addf %10, %12 : vector<8x128xf32>
    %c0_10 = arith.constant 0 : index
    %c0_11 = arith.constant 0 : index
    %14 = vector.load %arg6[%c0_10, %c0_11] : memref<8x128xf32, #tpu.memory_space<vmem>>, vector<8x128xf32>
    tpu.vector_store %arg6[%c0_10, %c0_11], %13 {strides = array<i32>} : memref<8x128xf32, #tpu.memory_space<vmem>>, vector<8x128xf32>,
    return
  }
  func.func @transform_0(%arg0: i32) -> (i32, i32) {
    %c0_i32 = arith.constant 0 : i32
    %c0_i32_0 = arith.constant 0 : i32
    return %arg0, %c0_i32 : i32, i32
  }
  func.func @transform_1(%arg0: i32) -> (i32, i32) {
    %c0_i32 = arith.constant 0 : i32
    %c0_i32_0 = arith.constant 0 : i32
    %c0_i32_1 = arith.constant 0 : i32
    return %c0_i32, %c0_i32_0 : i32, i32
  }
  func.func @transform_2(%arg0: i32) -> (i32, i32) {
    %c0_i32 = arith.constant 0 : i32
    %c0_i32_0 = arith.constant 0 : i32
    %c0_i32_1 = arith.constant 0 : i32
    return %c0_i32, %c0_i32_0 : i32, i32
  }
  func.func @transform_3(%arg0: i32) -> (i32, i32) {
    %c0_i32 = arith.constant 0 : i32
    %c0_i32_0 = arith.constant 0 : i32
    %c0_i32_1 = arith.constant 0 : i32
    return %c0_i32, %c0_i32_0 : i32, i32
  }
  func.func @transform_4(%arg0: i32) -> (i32, i32) {
    %c0_i32 = arith.constant 0 : i32
    %c0_i32_0 = arith.constant 0 : i32
    %c0_i32_1 = arith.constant 0 : i32
    return %c0_i32, %c0_i32_0 : i32, i32
  }
  func.func @transform_5(%arg0: i32) -> (i32, i32) {
    %c0_i32 = arith.constant 0 : i32
    %c0_i32_0 = arith.constant 0 : i32
    return %arg0, %c0_i32 : i32, i32
  }
}

</mosaic_0001>

<llo_original>
// kernel: bert_contrastive_head.1
$region0: #{bert_contrastive_head.1}
  #allocation0 [shape = 'u32[]', space=smem, size = 0x4, offset = 0x4, fixed_abs, tag = 'smem constant byte address 0x4 - core index']
  #allocation1 [shape = 'u32[144,128]{1,0:T(1,128)}', space=vmem, size = 0x12000, scoped, tag = 'internal scratch']
  %s0 = inlined_call_operand.vmem [shape: f32[16,128], index: 0, kind: input, shape index: {}]
  %s1 = inlined_call_operand.hbm [shape: bf16[128,128], index: 1, kind: input, shape index: {}]
  %s2 = inlined_call_operand.vmem [shape: f32[1,128], index: 2, kind: input, shape index: {}]
  %s3 = inlined_call_operand.hbm [shape: bf16[128,128], index: 3, kind: input, shape index: {}]
  %s4 = inlined_call_operand.vmem [shape: f32[1,128], index: 4, kind: input, shape index: {}]
  %s5 = inlined_call_operand.vmem [shape: f32[16,128], index: 5, kind: output, shape index: {}]
  %s6 = sld [smem:[#allocation0]]
  $region61: #{bert_contrastive_head.1} parent=0
    _
  %s8 = ssub.s32 1, %s6
  %s9 = scalar_select 0, %s8, %s6
  $region1: #{bert_contrastive_head.1} parent=0
    #allocation2 [shape = 'u8[32768]{0}', space=vmem, size = 0x8000, scoped, tag = 'input window, operand 1, single buffered']
    #allocation3 [shape = 's32[2]{0}', space=sflag, size = 0x8, scoped, tag = 'scoped memory for bert_contrastive_head.1']
    #allocation4 [shape = 'u8[32768]{0}', space=vmem, size = 0x8000, scoped, tag = 'input window, operand 3, single buffered']
    #allocation5 [shape = 's32[1]{0}', space=sflag, size = 0x4, scoped, tag = 'scoped memory for bert_contrastive_head.1']
    %10 = vsyncpa [#allocation3], 0
    %11 = vsyncpa [#allocation5], 0
    loop: start=0, step=1, limit=4
    $region2: #{bert_contrastive_head.1} parent=1 // loop_pre_header
      _
    $region3: #{bert_contrastive_head.1} parent=1 // loop_header
      %s13 = sphi 0, %s17
      %p14 = scmp.ge.s32.totalorder %s13, 4
      %s23 = sphi 0, %s25
      %s26 = sphi 0, %s23
      %s27 = sphi 0, %s26
      %s43 = sphi 0, %s27
      %s47 = sphi 0, %s47
      %s49 = sphi 0, %s47
      %s50 = sphi 0, %s49
      %s64 = sphi 0, %s50
      %s68 = sphi 0, %s68
      %s70 = sphi 0, %s68
      %s71 = sphi 0, %s70
      %s85 = sphi 0, %s71
      %s89 = sphi 0, %s89
      %s91 = sphi 0, %s89
      %s92 = sphi 0, %s91
      %s106 = sphi 0, %s92
      %s110 = sphi 0, %s110
      %s112 = sphi 0, %s110
      %s113 = sphi 0, %s112
      %s127 = sphi 0, %s113
      %s133 = sphi 0, %s135
      %s136 = sphi 0, %s133
      %s137 = sphi 0, %s136
      %s153 = sphi 0, %s137
    $region4: #{bert_contrastive_head.1} parent=1 // loop_header_branch
      %16 = sbr.rel (%p14) target = $region8
    $region5: #{bert_contrastive_head.1} parent=1 // loop_body
      %s18 = ssub.s32 %s13, 1
      %s19 = ssub.s32 %s13, 2
      %s20 = sadd.s32 %s13, 1
      %s21 = ssub.s32 %s13, %s20
      %p22 = scmp.eq.s32.totalorder %s21, 0
      %s24 = sadd.s32 %s23, 1
      %s25 = scalar_select %p22, %s23, %s24
      %p28 = pneg %p22
      %p29 = scmp.eq.s32.totalorder %s13, 1
      %p30 = por %p28, %p29
      %p31 = scmp.ne.s32.totalorder %s23, %s26
      %p32 = scmp.eq.s32.totalorder %s13, 0
      %p33 = por %p31, %p32
      %p34 = scmp.ne.s32.totalorder %s23, %s26
      %p35 = scmp.eq.s32.totalorder %s18, 1
      %p36 = por %p34, %p35
      %p37 = scmp.ne.s32.totalorder %s26, %s27
      %p38 = scmp.eq.s32.totalorder %s18, 0
      %p39 = por %p37, %p38
      %p40 = scmp.ne.s32.totalorder %s26, %s27
      %p41 = scmp.eq.s32.totalorder %s19, 1
      %p42 = por %p40, %p41
      %p44 = scmp.ne.s32.totalorder %s27, %s43
      %p45 = scmp.eq.s32.totalorder %s19, 0
      %p46 = por %p44, %p45
      %s48 = sadd.s32 %s47, 1
      %p51 = scmp.eq.s32.totalorder %s13, 1
      %p52 = scmp.ne.s32.totalorder %s47, %s49
      %p53 = scmp.eq.s32.totalorder %s13, 0
      %p54 = por %p52, %p53
      %p55 = scmp.ne.s32.totalorder %s47, %s49
      %p56 = scmp.eq.s32.totalorder %s18, 1
      %p57 = por %p55, %p56
      %p58 = scmp.ne.s32.totalorder %s49, %s50
      %p59 = scmp.eq.s32.totalorder %s18, 0
      %p60 = por %p58, %p59
      %p61 = scmp.ne.s32.totalorder %s49, %s50
      %p62 = scmp.eq.s32.totalorder %s19, 1
      %p63 = por %p61, %p62
      %p65 = scmp.ne.s32.totalorder %s50, %s64
      %p66 = scmp.eq.s32.totalorder %s19, 0
      %p67 = por %p65, %p66
      %s69 = sadd.s32 %s68, 1
      %p72 = scmp.eq.s32.totalorder %s13, 1
      %p73 = scmp.ne.s32.totalorder %s68, %s70
      %p74 = scmp.eq.s32.totalorder %s13, 0
      %p75 = por %p73, %p74
      %p76 = scmp.ne.s32.totalorder %s68, %s70
      %p77 = scmp.eq.s32.totalorder %s18, 1
      %p78 = por %p76, %p77
      %p79 = scmp.ne.s32.totalorder %s70, %s71
      %p80 = scmp.eq.s32.totalorder %s18, 0
      %p81 = por %p79, %p80
      %p82 = scmp.ne.s32.totalorder %s70, %s71
      %p83 = scmp.eq.s32.totalorder %s19, 1
      %p84 = por %p82, %p83
      %p86 = scmp.ne.s32.totalorder %s71, %s85
      %p87 = scmp.eq.s32.totalorder %s19, 0
      %p88 = por %p86, %p87
      %s90 = sadd.s32 %s89, 1
      %p93 = scmp.eq.s32.totalorder %s13, 1
      %p94 = scmp.ne.s32.totalorder %s89, %s91
      %p95 = scmp.eq.s32.totalorder %s13, 0
      %p96 = por %p94, %p95
      %p97 = scmp.ne.s32.totalorder %s89, %s91
      %p98 = scmp.eq.s32.totalorder %s18, 1
      %p99 = por %p97, %p98
      %p100 = scmp.ne.s32.totalorder %s91, %s92
      %p101 = scmp.eq.s32.totalorder %s18, 0
      %p102 = por %p100, %p101
      %p103 = scmp.ne.s32.totalorder %s91, %s92
      %p104 = scmp.eq.s32.totalorder %s19, 1
      %p105 = por %p103, %p104
      %p107 = scmp.ne.s32.totalorder %s92, %s106
      %p108 = scmp.eq.s32.totalorder %s19, 0
      %p109 = por %p107, %p108
      %s111 = sadd.s32 %s110, 1
      %p114 = scmp.eq.s32.totalorder %s13, 1
      %p115 = scmp.ne.s32.totalorder %s110, %s112
      %p116 = scmp.eq.s32.totalorder %s13, 0
      %p117 = por %p115, %p116
      %p118 = scmp.ne.s32.totalorder %s110, %s112
      %p119 = scmp.eq.s32.totalorder %s18, 1
      %p120 = por %p118, %p119
      %p121 = scmp.ne.s32.totalorder %s112, %s113
      %p122 = scmp.eq.s32.totalorder %s18, 0
      %p123 = por %p121, %p122
      %p124 = scmp.ne.s32.totalorder %s112, %s113
      %p125 = scmp.eq.s32.totalorder %s19, 1
      %p126 = por %p124, %p125
      %p128 = scmp.ne.s32.totalorder %s113, %s127
      %p129 = scmp.eq.s32.totalorder %s19, 0
      %p130 = por %p128, %p129
      %s131 = ssub.s32 %s13, %s20
      %p132 = scmp.eq.s32.totalorder %s131, 0
      %s134 = sadd.s32 %s133, 1
      %s135 = scalar_select %p132, %s133, %s134
      %p138 = pneg %p132
      %p139 = scmp.eq.s32.totalorder %s13, 1
      %p140 = por %p138, %p139
      %p141 = scmp.ne.s32.totalorder %s133, %s136
      %p142 = scmp.eq.s32.totalorder %s13, 0
      %p143 = por %p141, %p142
      %p144 = scmp.ne.s32.totalorder %s133, %s136
      %p145 = scmp.eq.s32.totalorder %s18, 1
      %p146 = por %p144, %p145
      %p147 = scmp.ne.s32.totalorder %s136, %s137
      %p148 = scmp.eq.s32.totalorder %s18, 0
      %p149 = por %p147, %p148
      %p150 = scmp.ne.s32.totalorder %s136, %s137
      %p151 = scmp.eq.s32.totalorder %s19, 1
      %p152 = por %p150, %p151
      %p154 = scmp.ne.s32.totalorder %s137, %s153
      %p155 = scmp.eq.s32.totalorder %s19, 0
      %p156 = por %p154, %p155
      %p157 = scmp.le.s32.totalorder 1, %s13
      %p158 = scmp.lt.s32.totalorder %s13, 3
      %p159 = pnand %p157, %p158
      %p160 = pneg %p159
      // Predicated region
      $region9: #{bert_contrastive_head.1} parent=5 // pred_check
        _
      $region10: #{bert_contrastive_head.1} parent=5 // pred_check_branch
        %162 = sbr.rel (%p159) target = $region12
      $region11: #{bert_contrastive_head.1} parent=5 // pred_region
        %s163 = ssub.s32 %s13, 1
        // Predicated region
        $region13: #{bert_contrastive_head.1} parent=11 // pred_check
          %p164 = pneg %p60
        $region14: #{bert_contrastive_head.1} parent=11 // pred_check_branch
          %166 = sbr.rel (%p164) target = $region16
        $region15: #{bert_contrastive_head.1} parent=11 // pred_region
          %s168 = ssub.s32 1024, 1024
          %169 = vsyncadd [#allocation3], %s168
          %s170 = sshll.u32 [#allocation2], 4
          %s171 = int_to_ptr.vmem [resolvable:$true] %s170
          %176 = dma.hbm_to_vmem [thread:$0]  %s1, 1024, %s171, [#allocation3], 64, 64, 4
        $region16: #{bert_contrastive_head.1} parent=11 // pred_fallthru
          _
        // Predicated region
        $region17: #{bert_contrastive_head.1} parent=11 // pred_check
          %p177 = pneg %p81
        $region18: #{bert_contrastive_head.1} parent=11 // pred_check_branch
          %179 = sbr.rel (%p177) target = $region20
        $region19: #{bert_contrastive_head.1} parent=11 // pred_region
          _
        $region20: #{bert_contrastive_head.1} parent=11 // pred_fallthru
          _
        // Predicated region
        $region21: #{bert_contrastive_head.1} parent=11 // pred_check
          %p180 = pneg %p102
        $region22: #{bert_contrastive_head.1} parent=11 // pred_check_branch
          %182 = sbr.rel (%p180) target = $region24
        $region23: #{bert_contrastive_head.1} parent=11 // pred_region
          %s184 = ssub.s32 1024, 1024
          %185 = vsyncadd [#allocation5], %s184
          %s186 = sshll.u32 [#allocation4], 4
          %s187 = int_to_ptr.vmem [resolvable:$true] %s186
          %192 = dma.hbm_to_vmem [thread:$0]  %s3, 1024, %s187, [#allocation5], 64, 64, 4
        $region24: #{bert_contrastive_head.1} parent=11 // pred_fallthru
          _
        // Predicated region
        $region25: #{bert_contrastive_head.1} parent=11 // pred_check
          %p193 = pneg %p123
        $region26: #{bert_contrastive_head.1} parent=11 // pred_check_branch
          %195 = sbr.rel (%p193) target = $region28
        $region27: #{bert_contrastive_head.1} parent=11 // pred_region
          _
        $region28: #{bert_contrastive_head.1} parent=11 // pred_fallthru
          _
      $region12: #{bert_contrastive_head.1} parent=5 // pred_fallthru
        _
      %p196 = scmp.lt.s32.totalorder %s13, 2
      // Predicated region
      $region29: #{bert_contrastive_head.1} parent=5 // pred_check
        %p197 = pneg %p196
      $region30: #{bert_contrastive_head.1} parent=5 // pred_check_branch
        %199 = sbr.rel (%p197) target = $region32
      $region31: #{bert_contrastive_head.1} parent=5 // pred_region
        // Predicated region
        $region33: #{bert_contrastive_head.1} parent=31 // pred_check
          %p200 = pneg %p33
        $region34: #{bert_contrastive_head.1} parent=31 // pred_check_branch
          %202 = sbr.rel (%p200) target = $region36
        $region35: #{bert_contrastive_head.1} parent=31 // pred_region
          %p203 = scmp.lt.s32.totalorder %s13, 1
          %s204 = scalar_select %p203, %s13, 1
          %s205 = smul.addr %s204, 8
          %s206 = scalar_lea.vmem %s0, %s205
        $region36: #{bert_contrastive_head.1} parent=31 // pred_fallthru
          _
      $region32: #{bert_contrastive_head.1} parent=5 // pred_fallthru
        _
      %p207 = scmp.le.s32.totalorder 1, %s13
      %p208 = scmp.lt.s32.totalorder %s13, 3
      %p209 = pnand %p207, %p208
      %p210 = pneg %p209
      // Predicated region
      $region37: #{bert_contrastive_head.1} parent=5 // pred_check
        _
      $region38: #{bert_contrastive_head.1} parent=5 // pred_check_branch
        %212 = sbr.rel (%p209) target = $region40
      $region39: #{bert_contrastive_head.1} parent=5 // pred_region
        %s213 = ssub.s32 %s13, 1
        // Predicated region
        $region41: #{bert_contrastive_head.1} parent=39 // pred_check
          %p214 = pneg %p60
        $region42: #{bert_contrastive_head.1} parent=39 // pred_check_branch
          %216 = sbr.rel (%p214) target = $region44
        $region43: #{bert_contrastive_head.1} parent=39 // pred_region
          %217 = dma.done [#allocation3], 1024
        $region44: #{bert_contrastive_head.1} parent=39 // pred_fallthru
          _
        // Predicated region
        $region45: #{bert_contrastive_head.1} parent=39 // pred_check
          %p218 = pneg %p102
        $region46: #{bert_contrastive_head.1} parent=39 // pred_check_branch
          %220 = sbr.rel (%p218) target = $region48
        $region47: #{bert_contrastive_head.1} parent=39 // pred_region
          %221 = dma.done [#allocation5], 1024
        $region48: #{bert_contrastive_head.1} parent=39 // pred_fallthru
          _
        %p222 = scmp.lt.s32.totalorder %s18, 1
        %s223 = scalar_select %p222, %s18, 1
        %s224 = smul.addr %s223, 8
        %s225 = scalar_lea.vmem %s0, %s224
        %p226 = pneg %p39
        %p227 = pneg %p36
        %p228 = pneg %p60
        %p229 = pneg %p57
        %p230 = pneg %p81
        %p231 = pneg %p78
        %p232 = pneg %p102
        %p233 = pneg %p99
        %p234 = pneg %p123
        %p235 = pneg %p120
        %p236 = pneg %p149
        %p237 = pneg %p146
        %p238 = scmp.lt.s32.totalorder %s18, 1
        %s239 = scalar_select %p238, %s18, 1
        %s240 = smul.addr %s239, 8
        %s241 = scalar_lea.vmem %s5, %s240
        %p242 = scmp.lt.s32.totalorder %s18, 1
        %s243 = scalar_select %p242, %s18, 1
        %s244 = smul.addr %s243, 8
        %s245 = scalar_lea.vmem %s0, %s244
        %p246 = scmp.lt.s32.totalorder %s18, 1
        %s247 = scalar_select %p246, %s18, 1
        %s248 = smul.addr %s247, 8
        %s249 = scalar_lea.vmem %s5, %s248
        %v251 = vld [vmem:[%s245] sm:$0xff]
        %v252 = vpack.c.bf16 %v251, %v251
        %v253 = vld [vmem:[#allocation2] sm:$0xf]
        %v254 = vld [vmem:[#allocation2 + $0x4] sm:$0xf]
        %v255 = vld [vmem:[#allocation2 + $0x8] sm:$0xf]
        %v256 = vld [vmem:[#allocation2 + $0xc] sm:$0xf]
        %v257 = vld [vmem:[#allocation2 + $0x10] sm:$0xf]
        %v258 = vld [vmem:[#allocation2 + $0x14] sm:$0xf]
        %v259 = vld [vmem:[#allocation2 + $0x18] sm:$0xf]
        %v260 = vld [vmem:[#allocation2 + $0x1c] sm:$0xf]
        %v261 = vld [vmem:[#allocation2 + $0x20] sm:$0xf]
        %v262 = vld [vmem:[#allocation2 + $0x24] sm:$0xf]
        %v263 = vld [vmem:[#allocation2 + $0x28] sm:$0xf]
        %v264 = vld [vmem:[#allocation2 + $0x2c] sm:$0xf]
        %v265 = vld [vmem:[#allocation2 + $0x30] sm:$0xf]
        %v266 = vld [vmem:[#allocation2 + $0x34] sm:$0xf]
        %v267 = vld [vmem:[#allocation2 + $0x38] sm:$0xf]
        %v268 = vld [vmem:[#allocation2 + $0x3c] sm:$0xf]
        %v269 = vld [vmem:[%s2] sm:$0x1]
        %v271 = vlaneseq
        %v272 = vshrl.u32 %v271, 7
        %v273 = vsub.s32 0, %v272
        %v274 = vrot.slane %v269, %v273
        %v292 = vunpack.c.l.b16 %v253
        %v293 = vunpack.c.l.b16 %v254
        %v294 = vunpack.c.l.b16 %v255
        %v295 = vunpack.c.l.b16 %v256
        %v296 = vunpack.c.l.b16 %v257
        %v297 = vunpack.c.l.b16 %v258
        %v298 = vunpack.c.l.b16 %v259
        %v299 = vunpack.c.l.b16 %v260
        %v300 = vunpack.c.l.b16 %v261
        %v301 = vunpack.c.l.b16 %v262
        %v302 = vunpack.c.l.b16 %v263
        %v303 = vunpack.c.l.b16 %v264
        %v304 = vunpack.c.l.b16 %v265
        %v305 = vunpack.c.l.b16 %v266
        %v306 = vunpack.c.l.b16 %v267
        %v307 = vunpack.c.l.b16 %v268
        %v308 = vpack.c.b16 %v293, %v292
        %v309 = vpack.c.b16 %v295, %v294
        %v310 = vpack.c.b16 %v297, %v296
        %v311 = vpack.c.b16 %v299, %v298
        %v312 = vpack.c.b16 %v301, %v300
        %v313 = vpack.c.b16 %v303, %v302
        %v314 = vpack.c.b16 %v305, %v304
        %v315 = vpack.c.b16 %v307, %v306
        %324 = vmatprep.subr.bf16.mxu0 0
        %325 = vmatpush1.bf16.msra.mxu0 %v308
        %326 = vmatprep.subr.bf16.mxu0 0
        %327 = vmatpush1.bf16.msra.mxu0 %v309
        %328 = vmatprep.subr.bf16.mxu0 0
        %329 = vmatpush1.bf16.msra.mxu0 %v310
        %330 = vmatprep.subr.bf16.mxu0 0
        %331 = vmatpush1.bf16.msra.mxu0 %v311
        %332 = vmatprep.subr.bf16.mxu0 0
        %333 = vmatpush1.bf16.msra.mxu0 %v312
        %334 = vmatprep.subr.bf16.mxu0 0
        %335 = vmatpush1.bf16.msra.mxu0 %v313
        %336 = vmatprep.subr.bf16.mxu0 0
        %337 = vmatpush1.bf16.msra.mxu0 %v314
        %338 = vmatprep.subr.bf16.mxu0 0
        %339 = vmatpush1.bf16.msra.mxu0 %v315
        %340 = vmatprep.subr.bf16.mxu0 0
        %341 = vmatpush1.bf16.msra.mxu0 0
        %342 = vmatprep.subr.bf16.mxu0 0
        %343 = vmatpush1.bf16.msra.mxu0 0
        %344 = vmatprep.subr.bf16.mxu0 0
        %345 = vmatpush1.bf16.msra.mxu0 0
        %346 = vmatprep.subr.bf16.mxu0 0
        %347 = vmatpush1.bf16.msra.mxu0 0
        %348 = vmatprep.subr.bf16.mxu0 0
        %349 = vmatpush1.bf16.msra.mxu0 0
        %350 = vmatprep.subr.bf16.mxu0 0
        %351 = vmatpush1.bf16.msra.mxu0 0
        %352 = vmatprep.subr.bf16.mxu0 0
        %353 = vmatpush1.bf16.msra.mxu0 0
        %354 = vmatprep.subr.bf16.mxu0 0
        %355 = vmatpush1.bf16.msra.mxu0 0
        %356 = vmatprep.mubr.bf16.mxu0 0
        %357 = vmatmul.mubr.bf16.gmra.mrb[0].mxu0 %v252
        %v358 = vpop.f32.mrb[0].mxu0
        %v359 = vadd.f32 %v274, %v358
        %v360 = vpop.f32.mrb[0].mxu0
        %v361 = vpop.f32.mrb[0].mxu0
        %v362 = vpop.f32.mrb[0].mxu0
        %363 = vdwg.mxu0
        %v364 = vtanh.pop %v359
        %v365 = vpack.c.bf16 %v364, %v364
        %v366 = vld [vmem:[#allocation4] sm:$0xf]
        %v367 = vld [vmem:[#allocation4 + $0x4] sm:$0xf]
        %v368 = vld [vmem:[#allocation4 + $0x8] sm:$0xf]
        %v369 = vld [vmem:[#allocation4 + $0xc] sm:$0xf]
        %v370 = vld [vmem:[#allocation4 + $0x10] sm:$0xf]
        %v371 = vld [vmem:[#allocation4 + $0x14] sm:$0xf]
        %v372 = vld [vmem:[#allocation4 + $0x18] sm:$0xf]
        %v373 = vld [vmem:[#allocation4 + $0x1c] sm:$0xf]
        %v374 = vld [vmem:[#allocation4 + $0x20] sm:$0xf]
        %v375 = vld [vmem:[#allocation4 + $0x24] sm:$0xf]
        %v376 = vld [vmem:[#allocation4 + $0x28] sm:$0xf]
        %v377 = vld [vmem:[#allocation4 + $0x2c] sm:$0xf]
        %v378 = vld [vmem:[#allocation4 + $0x30] sm:$0xf]
        %v379 = vld [vmem:[#allocation4 + $0x34] sm:$0xf]
        %v380 = vld [vmem:[#allocation4 + $0x38] sm:$0xf]
        %v381 = vld [vmem:[#allocation4 + $0x3c] sm:$0xf]
        %v382 = vld [vmem:[%s4] sm:$0x1]
        %v384 = vlaneseq
        %v385 = vshrl.u32 %v384, 7
        %v386 = vsub.s32 0, %v385
        %v387 = vrot.slane %v382, %v386
        %v405 = vunpack.c.l.b16 %v366
        %v406 = vunpack.c.l.b16 %v367
        %v407 = vunpack.c.l.b16 %v368
        %v408 = vunpack.c.l.b16 %v369
        %v409 = vunpack.c.l.b16 %v370
        %v410 = vunpack.c.l.b16 %v371
        %v411 = vunpack.c.l.b16 %v372
        %v412 = vunpack.c.l.b16 %v373
        %v413 = vunpack.c.l.b16 %v374
        %v414 = vunpack.c.l.b16 %v375
        %v415 = vunpack.c.l.b16 %v376
        %v416 = vunpack.c.l.b16 %v377
        %v417 = vunpack.c.l.b16 %v378
        %v418 = vunpack.c.l.b16 %v379
        %v419 = vunpack.c.l.b16 %v380
        %v420 = vunpack.c.l.b16 %v381
        %v421 = vpack.c.b16 %v406, %v405
        %v422 = vpack.c.b16 %v408, %v407
        %v423 = vpack.c.b16 %v410, %v409
        %v424 = vpack.c.b16 %v412, %v411
        %v425 = vpack.c.b16 %v414, %v413
        %v426 = vpack.c.b16 %v416, %v415
        %v427 = vpack.c.b16 %v418, %v417
        %v428 = vpack.c.b16 %v420, %v419
        %437 = vmatprep.subr.bf16.mxu0 0
        %438 = vmatpush1.bf16.msra.mxu0 %v421
        %439 = vmatprep.subr.bf16.mxu0 0
        %440 = vmatpush1.bf16.msra.mxu0 %v422
        %441 = vmatprep.subr.bf16.mxu0 0
        %442 = vmatpush1.bf16.msra.mxu0 %v423
        %443 = vmatprep.subr.bf16.mxu0 0
        %444 = vmatpush1.bf16.msra.mxu0 %v424
        %445 = vmatprep.subr.bf16.mxu0 0
        %446 = vmatpush1.bf16.msra.mxu0 %v425
        %447 = vmatprep.subr.bf16.mxu0 0
        %448 = vmatpush1.bf16.msra.mxu0 %v426
        %449 = vmatprep.subr.bf16.mxu0 0
        %450 = vmatpush1.bf16.msra.mxu0 %v427
        %451 = vmatprep.subr.bf16.mxu0 0
        %452 = vmatpush1.bf16.msra.mxu0 %v428
        %453 = vmatprep.subr.bf16.mxu0 0
        %454 = vmatpush1.bf16.msra.mxu0 0
        %455 = vmatprep.subr.bf16.mxu0 0
        %456 = vmatpush1.bf16.msra.mxu0 0
        %457 = vmatprep.subr.bf16.mxu0 0
        %458 = vmatpush1.bf16.msra.mxu0 0
        %459 = vmatprep.subr.bf16.mxu0 0
        %460 = vmatpush1.bf16.msra.mxu0 0
        %461 = vmatprep.subr.bf16.mxu0 0
        %462 = vmatpush1.bf16.msra.mxu0 0
        %463 = vmatprep.subr.bf16.mxu0 0
        %464 = vmatpush1.bf16.msra.mxu0 0
        %465 = vmatprep.subr.bf16.mxu0 0
        %466 = vmatpush1.bf16.msra.mxu0 0
        %467 = vmatprep.subr.bf16.mxu0 0
        %468 = vmatpush1.bf16.msra.mxu0 0
        %469 = vmatprep.mubr.bf16.mxu0 0
        %470 = vmatmul.mubr.bf16.gmra.mrb[0].mxu0 %v365
        %v471 = vpop.f32.mrb[0].mxu0
        %v472 = vadd.f32 %v387, %v471
        %v473 = vpop.f32.mrb[0].mxu0
        %v474 = vpop.f32.mrb[0].mxu0
        %v475 = vpop.f32.mrb[0].mxu0
        %476 = vdwg.mxu0
        %477 = vst [vmem:[%s249] sm:$0xff] %v472
        %p478 = scmp.lt.s32.totalorder %s18, 1
        %s479 = scalar_select %p478, %s18, 1
        %s480 = smul.addr %s479, 8
        %s481 = scalar_lea.vmem %s5, %s480
        // Predicated region
        $region49: #{bert_contrastive_head.1} parent=39 // pred_check
          %p482 = pneg %p146
        $region50: #{bert_contrastive_head.1} parent=39 // pred_check_branch
          %484 = sbr.rel (%p482) target = $region52
        $region51: #{bert_contrastive_head.1} parent=39 // pred_region
          _
        $region52: #{bert_contrastive_head.1} parent=39 // pred_fallthru
          _
      $region40: #{bert_contrastive_head.1} parent=5 // pred_fallthru
        _
      %p485 = scmp.le.s32.totalorder 2, %s13
      // Predicated region
      $region53: #{bert_contrastive_head.1} parent=5 // pred_check
        %p486 = pneg %p485
      $region54: #{bert_contrastive_head.1} parent=5 // pred_check_branch
        %488 = sbr.rel (%p486) target = $region56
      $region55: #{bert_contrastive_head.1} parent=5 // pred_region
        %s489 = ssub.s32 %s13, 2
        // Predicated region
        $region57: #{bert_contrastive_head.1} parent=55 // pred_check
          %p490 = pneg %p152
        $region58: #{bert_contrastive_head.1} parent=55 // pred_check_branch
          %492 = sbr.rel (%p490) target = $region60
        $region59: #{bert_contrastive_head.1} parent=55 // pred_region
          %p493 = scmp.lt.s32.totalorder %s19, 1
          %s494 = scalar_select %p493, %s19, 1
          %s495 = smul.addr %s494, 8
          %s496 = scalar_lea.vmem %s5, %s495
        $region60: #{bert_contrastive_head.1} parent=55 // pred_fallthru
          _
      $region56: #{bert_contrastive_head.1} parent=5 // pred_fallthru
        _
    $region6: #{bert_contrastive_head.1} parent=1 // loop_footer
      %s17 = sadd.s32 1, %s13
    $region7: #{bert_contrastive_head.1} parent=1 // loop_footer_branch
      %12 = sbr.rel target = $region3
    $region8: #{bert_contrastive_head.1} parent=1 // loop_exit
      _
    %497 = vsyncpa [#allocation3], 1
    %s498 = scalar_lea.sflag [#allocation3], 1
    %499 = vsyncpa %s498, 1
    %500 = vsyncpa [#allocation5], 1

</llo_original>
